<compile_context>
chip_gen: v5e
topology: v5e:2x2
jax: 0.10.0
libtpu: 0.0.40
codegen_flags: <defaults>
</compile_context>

<pallas_src>
import functools

import jax
import jax.numpy as jnp
from jax.experimental import pallas as pl
from jax.experimental.pallas import tpu as pltpu


def _round_up(x, m):
    return ((x + m - 1) // m) * m


def _make_kernel(negative_slope, dropout_rate, apply_dropout, batch_norm, eps):
    keep_scale = 1.0 / (1.0 - dropout_rate) if apply_dropout else 1.0

    def kernel(*refs):
        it = iter(refs)
        x_ref = next(it)        # (tm, tk)
        w_ref = next(it)        # (tk, tn)
        b_ref = next(it)        # (1, tn)
        u_ref = next(it) if apply_dropout else None   # (tm, tn) uniform [0,1)
        if batch_norm:
            g_ref = next(it)    # (1, tn)
            beta_ref = next(it)  # (1, tn)
        o_ref = next(it)        # (tm, tn)
        acc_ref = next(it)      # (tm, tn) f32 accumulator (scratch)

        k = pl.program_id(2)

        @pl.when(k == 0)
        def _init():
            acc_ref[...] = jnp.zeros_like(acc_ref)

        # Steady state: MXU only, f32 accumulation.
        acc_ref[...] += jnp.dot(
            x_ref[...], w_ref[...], preferred_element_type=jnp.float32
        )

        @pl.when(k == pl.num_programs(2) - 1)
        def _finalize():
            # Linear bias
            y = acc_ref[...] + b_ref[...]
            # LeakyReLU (PyTorch default negative_slope = 0.01)
            y = jnp.where(y > 0, y, negative_slope * y)
            # Dropout (train mode): mask precomputed outside the kernel,
            # inverted-dropout scaling folded into the kept branch.
            if apply_dropout:
                keep = u_ref[...] >= dropout_rate
                y = jnp.where(keep, y * keep_scale, 0.0)
            # Optional BatchNorm1d over the batch axis (train-mode batch stats).
            # Full batch lives in this M block, so stats are exact.
            if batch_norm:
                mean = jnp.mean(y, axis=0, keepdims=True)
                var = jnp.mean(y * y, axis=0, keepdims=True) - mean * mean
                y = (y - mean) * jax.lax.rsqrt(var + eps)
                y = y * g_ref[...] + beta_ref[...]
            o_ref[...] = y.astype(o_ref.dtype)

    return kernel


@functools.partial(
    jax.jit,
    static_argnames=(
        "dropout_rate", "negative_slope", "training", "batch_norm",
        "tm", "tn", "tk",
    ),
)
def linear_block(
    x,
    w,
    b,
    gamma=None,
    beta=None,
    rng_key=None,
    *,
    dropout_rate=0.1,
    negative_slope=0.01,
    training=False,
    batch_norm=False,
    tm=256,
    tn=256,
    tk=512,
):
    """x: (B, n_input), w: (n_input, n_output), b/gamma/beta: (1, n_output) or (n_output,)."""
    B, n_in = x.shape
    n_out = w.shape[1]
    b = b.reshape(1, n_out)
    apply_dropout = bool(training) and float(dropout_rate) > 0.0

    # --- tile sizes & padded problem dims (MXU / lane aligned) ---
    if batch_norm:
        # Keep the whole batch in one M block so batch statistics are exact.
        tm_eff = B
    else:
        tm_eff = min(tm, _round_up(B, 8))
    Mp = _round_up(B, tm_eff)
    tn_eff = min(tn, _round_up(n_out, 128))
    Np = _round_up(n_out, tn_eff)
    tk_eff = min(tk, _round_up(n_in, 128))
    Kp = _round_up(n_in, tk_eff)

    def pad2(a, rows, cols):
        pr, pc = rows - a.shape[0], cols - a.shape[1]
        return jnp.pad(a, ((0, pr), (0, pc))) if (pr or pc) else a

    xp = pad2(x, Mp, Kp)
    wp = pad2(w, Kp, Np)
    bp = pad2(b, 1, Np)

    inputs = [xp, wp, bp]
    in_specs = [
        pl.BlockSpec((tm_eff, tk_eff), lambda i, j, k: (i, k)),
        pl.BlockSpec((tk_eff, tn_eff), lambda i, j, k: (k, j)),
        pl.BlockSpec((1, tn_eff), lambda i, j, k: (0, j)),
    ]

    if apply_dropout:
        if rng_key is None:
            rng_key = jax.random.PRNGKey(0)
        # TODO(synk): RNG stream differs from torch.nn.Dropout (different PRNG);
        # only the keep-prob + 1/(1-p) inverted-dropout semantics are matched.
        # (pltpu.prng_* is not used because it has no CPU/interpret lowering.)
        u = jax.random.uniform(rng_key, (Mp, Np), dtype=jnp.float32)
        inputs.append(u)
        in_specs.append(pl.BlockSpec((tm_eff, tn_eff), lambda i, j, k: (i, j)))

    if batch_norm:
        gp = pad2(gamma.reshape(1, n_out), 1, Np)
        betap = pad2(beta.reshape(1, n_out), 1, Np)
        inputs += [gp, betap]
        in_specs += [
            pl.BlockSpec((1, tn_eff), lambda i, j, k: (0, j)),
            pl.BlockSpec((1, tn_eff), lambda i, j, k: (0, j)),
        ]

    kernel = _make_kernel(
        float(negative_slope), float(dropout_rate), apply_dropout,
        bool(batch_norm), 1e-5,
    )

    flops = 2 * Mp * Kp * Np
    bytes_accessed = 4 * (Mp * Kp + Kp * Np + Mp * Np + Np)
    if apply_dropout:
        bytes_accessed += 4 * Mp * Np

    call_kwargs = {}
    if jax.default_backend() == "tpu":
        call_kwargs["compiler_params"] = pltpu.CompilerParams(
            dimension_semantics=("parallel", "parallel", "arbitrary"),
        )

    out = pl.pallas_call(
        kernel,
        out_shape=jax.ShapeDtypeStruct((Mp, Np), x.dtype),
        grid=(Mp // tm_eff, Np // tn_eff, Kp // tk_eff),
        in_specs=in_specs,
        out_specs=pl.BlockSpec((tm_eff, tn_eff), lambda i, j, k: (i, j)),
        scratch_shapes=[pltpu.VMEM((tm_eff, tn_eff), jnp.float32)],
        cost_estimate=pl.CostEstimate(
            flops=flops, transcendentals=0, bytes_accessed=bytes_accessed,
        ),
        **call_kwargs,
    )(*inputs)

    return out[:B, :n_out]


def _reference(x, w, b, negative_slope=0.01):
    y = jnp.dot(x, w, precision=jax.lax.Precision.HIGHEST) + b.reshape(1, -1)
    return jnp.where(y > 0, y, negative_slope * y)


if __name__ == "__main__":
    # Lane-friendly but still small shapes consistent with the module's forward.
    batch, n_input, n_output = 128, 256, 256
    dropout_rate = 0.25

    key = jax.random.PRNGKey(0)
    kx, kw, kb = jax.random.split(key, 3)

    x = jax.random.normal(kx, (batch, n_input), dtype=jnp.float32)
    # Deterministic "PyTorch-like" init: U(-1/sqrt(n_input), 1/sqrt(n_input))
    bound = 1.0 / (n_input ** 0.5)
    w = jax.random.uniform(kw, (n_input, n_output), jnp.float32, -bound, bound)
    b = jax.random.uniform(kb, (1, n_output), jnp.float32, -bound, bound)
    gamma = jnp.ones((1, n_output), jnp.float32)
    beta = jnp.zeros((1, n_output), jnp.float32)

    # 1) Eval-mode forward (dropout = identity), batch_norm=False (module default).
    out = linear_block(x, w, b, dropout_rate=dropout_rate, training=False)
    out = jax.block_until_ready(out)
    assert out.shape == (batch, n_output)
    ref = _reference(x, w, b)
    assert jnp.allclose(out, ref, atol=1e-4, rtol=1e-4), "mismatch vs reference"

    # 2) Unaligned small shapes exercise the padding path.
    xs = jax.random.normal(kx, (8, 32), dtype=jnp.float32)
    ws = jax.random.uniform(kw, (32, 64), jnp.float32, -bound, bound)
    bs = jax.random.uniform(kb, (1, 64), jnp.float32, -bound, bound)
    outs = jax.block_until_ready(
        linear_block(xs, ws, bs, dropout_rate=dropout_rate, training=False)
    )
    assert jnp.allclose(outs, _reference(xs, ws, bs), atol=1e-4, rtol=1e-4), \
        "mismatch vs reference (padded path)"

    # 3) Train-mode dropout + batch-norm path (batch statistics, like BN train mode).
    out_bn = linear_block(
        x, w, b, gamma, beta, jax.random.PRNGKey(123),
        dropout_rate=dropout_rate, training=True, batch_norm=True,
    )
    out_bn = jax.block_until_ready(out_bn)
    assert out_bn.shape == (batch, n_output)
    assert bool(jnp.all(jnp.isfinite(out_bn)))

    print("KERNEL_OK")
</pallas_src>

<mosaic_0001>
module attributes {stable_mosaic.version = 11 : i64} {
  func.func @kernel(%arg0: i32, %arg1: i32, %arg2: i32, %arg3: memref<128x256xf32, #tpu.memory_space<vmem>>, %arg4: memref<256x256xf32, #tpu.memory_space<vmem>>, %arg5: memref<1x256xf32, #tpu.memory_space<vmem>>, %arg6: memref<128x256xf32, #tpu.memory_space<vmem>>, %arg7: memref<128x256xf32, #tpu.memory_space<vmem>>) attributes {dimension_semantics = [#tpu.dimension_semantics<arbitrary>, #tpu.dimension_semantics<arbitrary>, #tpu.dimension_semantics<arbitrary>], iteration_bounds = array<i64: 1, 1, 1>, scalar_prefetch = 0 : i64, scratch_operands = 1 : i64, tpu.core_type = #tpu.core_type<tc>, window_params = [{transform_indices = @transform_0, window_bounds = array<i64: 128, 256>}, {transform_indices = @transform_1, window_bounds = array<i64: 256, 256>}, {transform_indices = @transform_2, window_bounds = array<i64: 1, 256>}, {transform_indices = @transform_3, window_bounds = array<i64: 128, 256>}]} {
    %c0_i32 = arith.constant 0 : i32
    %0 = arith.cmpi eq, %arg2, %c0_i32 : i32
    %1 = arith.extui %0 : i1 to i32
    %c0_i32_0 = arith.constant 0 : i32
    %2 = arith.cmpi ne, %1, %c0_i32_0 : i32
    scf.if %2 {
      %cst_10 = arith.constant 0.000000e+00 : f32
      %12 = vector.broadcast %cst_10 : f32 to vector<128x256xf32>
      %c0_11 = arith.constant 0 : index
      %c0_12 = arith.constant 0 : index
      %13 = vector.load %arg7[%c0_11, %c0_12] : memref<128x256xf32, #tpu.memory_space<vmem>>, vector<128x256xf32>
      tpu.vector_store %arg7[%c0_11, %c0_12], %12 {strides = array<i32>} : memref<128x256xf32, #tpu.memory_space<vmem>>, vector<128x256xf32>,
    } else {
    }
    %c0 = arith.constant 0 : index
    %c0_1 = arith.constant 0 : index
    %3 = vector.load %arg7[%c0, %c0_1] : memref<128x256xf32, #tpu.memory_space<vmem>>, vector<128x256xf32>
    %c0_2 = arith.constant 0 : index
    %c0_3 = arith.constant 0 : index
    %4 = vector.load %arg3[%c0_2, %c0_3] : memref<128x256xf32, #tpu.memory_space<vmem>>, vector<128x256xf32>
    %c0_4 = arith.constant 0 : index
    %c0_5 = arith.constant 0 : index
    %5 = vector.load %arg4[%c0_4, %c0_5] : memref<256x256xf32, #tpu.memory_space<vmem>>, vector<256x256xf32>
    %cst = arith.constant dense<0.000000e+00> : vector<128x256xf32>
    %6 = tpu.matmul %4, %5, %cst {dimension_numbers = #tpu.dot_dimension_numbers<[1], [0], [0], [1], [0, 0, 1, 1], [], []>} : vector<128x256xf32>, vector<256x256xf32>, vector<128x256xf32> -> vector<128x256xf32>
    %7 = arith.addf %3, %6 : vector<128x256xf32>
    %c0_6 = arith.constant 0 : index
    %c0_7 = arith.constant 0 : index
    %8 = vector.load %arg7[%c0_6, %c0_7] : memref<128x256xf32, #tpu.memory_space<vmem>>, vector<128x256xf32>
    tpu.vector_store %arg7[%c0_6, %c0_7], %7 {strides = array<i32>} : memref<128x256xf32, #tpu.memory_space<vmem>>, vector<128x256xf32>,
    %c0_i32_8 = arith.constant 0 : i32
    %9 = arith.cmpi eq, %arg2, %c0_i32_8 : i32
    %10 = arith.extui %9 : i1 to i32
    %c0_i32_9 = arith.constant 0 : i32
    %11 = arith.cmpi ne, %10, %c0_i32_9 : i32
    scf.if %11 {
      %c0_10 = arith.constant 0 : index
      %c0_11 = arith.constant 0 : index
      %12 = vector.load %arg7[%c0_10, %c0_11] : memref<128x256xf32, #tpu.memory_space<vmem>>, vector<128x256xf32>
      %c0_12 = arith.constant 0 : index
      %c0_13 = arith.constant 0 : index
      %13 = vector.load %arg5[%c0_12, %c0_13] : memref<1x256xf32, #tpu.memory_space<vmem>>, vector<1x256xf32>
      %14 = vector.broadcast %13 : vector<1x256xf32> to vector<128x256xf32>
      %15 = arith.addf %12, %14 : vector<128x256xf32>
      %cst_14 = arith.constant 0.000000e+00 : f32
      %16 = vector.broadcast %cst_14 : f32 to vector<128x256xf32>
      %17 = arith.cmpf ogt, %15, %16 : vector<128x256xf32>
      %cst_15 = arith.constant 0.00999999977 : f32
      %18 = vector.broadcast %cst_15 : f32 to vector<128x256xf32>
      %19 = arith.mulf %18, %15 : vector<128x256xf32>
      %20 = arith.select %17, %15, %19 : vector<128x256xi1>, vector<128x256xf32>
      %c0_16 = arith.constant 0 : index
      %c0_17 = arith.constant 0 : index
      %21 = vector.load %arg6[%c0_16, %c0_17] : memref<128x256xf32, #tpu.memory_space<vmem>>, vector<128x256xf32>
      tpu.vector_store %arg6[%c0_16, %c0_17], %20 {strides = array<i32>} : memref<128x256xf32, #tpu.memory_space<vmem>>, vector<128x256xf32>,
    } else {
    }
    return
  }
  func.func @transform_0(%arg0: i32, %arg1: i32, %arg2: i32) -> (i32, i32) {
    %c0_i32 = arith.constant 0 : i32
    return %arg0, %arg2 : i32, i32
  }
  func.func @transform_1(%arg0: i32, %arg1: i32, %arg2: i32) -> (i32, i32) {
    %c0_i32 = arith.constant 0 : i32
    return %arg2, %arg1 : i32, i32
  }
  func.func @transform_2(%arg0: i32, %arg1: i32, %arg2: i32) -> (i32, i32) {
    %c0_i32 = arith.constant 0 : i32
    %c0_i32_0 = arith.constant 0 : i32
    return %c0_i32, %arg1 : i32, i32
  }
  func.func @transform_3(%arg0: i32, %arg1: i32, %arg2: i32) -> (i32, i32) {
    %c0_i32 = arith.constant 0 : i32
    return %arg0, %arg1 : i32, i32
  }
}

</mosaic_0001>

<llo_original>
// kernel: linear_block.1
$region0: #{linear_block.1}
  #allocation0 [shape = 'u32[]', space=smem, size = 0x4, offset = 0x4, fixed_abs, tag = 'smem constant byte address 0x4 - core index']
  #allocation1 [shape = 'u32[72,128]{1,0:T(1,128)}', space=vmem, size = 0x9000, scoped, tag = 'internal scratch']
  #allocation2 [shape = 'f32[128,256]{1,0:T(8,128)}', space=vmem, size = 0x20000, scoped, tag = 'scratch operand']
  %s0 = inlined_call_operand.hbm [shape: f32[128,256], index: 0, kind: input, shape index: {}]
  %s1 = inlined_call_operand.hbm [shape: f32[256,256], index: 1, kind: input, shape index: {}]
  %s2 = inlined_call_operand.hbm [shape: f32[1,256], index: 2, kind: input, shape index: {}]
  %s3 = inlined_call_operand.hbm [shape: f32[128,256], index: 3, kind: output, shape index: {}]
  %s4 = sld [smem:[#allocation0]]
  $region42: #{linear_block.1} parent=0
    _
  %s6 = ssub.s32 1, %s4
  %s7 = scalar_select 0, %s6, %s4
  $region1: #{linear_block.1} parent=0
    #allocation3 [shape = 'u8[131072]{0}', space=vmem, size = 0x20000, scoped, tag = 'input window, operand 0, single buffered']
    #allocation4 [shape = 's32[1]{0}', space=sflag, size = 0x4, scoped, tag = 'scoped memory for linear_block.1']
    #allocation5 [shape = 's32[1]{0}', space=sflag, size = 0x4, scoped, tag = 'scoped memory for linear_block.1']
    #allocation6 [shape = 'u8[262144]{0}', space=vmem, size = 0x40000, scoped, tag = 'input window, operand 1, single buffered']
    #allocation7 [shape = 's32[1]{0}', space=sflag, size = 0x4, scoped, tag = 'scoped memory for linear_block.1']
    #allocation8 [shape = 'u8[1024]{0}', space=vmem, size = 0x400, scoped, tag = 'input window, operand 2, single buffered']
    #allocation9 [shape = 'u8[131072]{0}', space=vmem, size = 0x20000, scoped, tag = 'output window, operand 0, single buffered']
    %8 = vsyncpa [#allocation4], 0
    %9 = vsyncpa [#allocation7], 0
    %10 = vsyncpa [#allocation5], 0
    // Predicated region
    $region2: #{linear_block.1} parent=1 // pred_check
      _
    $region3: #{linear_block.1} parent=1 // pred_check_branch
      %12 = sbr.rel (0) target = $region5
    $region4: #{linear_block.1} parent=1 // pred_region
      %14 = vsyncadd [#allocation4], 0
      %s15 = sshll.u32 %s0, 4
      %s16 = int_to_ptr.hbm [resolvable:$true] %s15
      %s17 = sshll.u32 [#allocation3], 4
      %s18 = int_to_ptr.vmem [resolvable:$true] %s17
      %23 = dma.hbm_to_vmem [thread:$0]  %s16, 4096, %s18, [#allocation4], 256, 256, 16
    $region5: #{linear_block.1} parent=1 // pred_fallthru
      _
    // Predicated region
    $region6: #{linear_block.1} parent=1 // pred_check
      _
    $region7: #{linear_block.1} parent=1 // pred_check_branch
      %25 = sbr.rel (0) target = $region9
    $region8: #{linear_block.1} parent=1 // pred_region
      %27 = vsyncadd [#allocation7], 0
      %s28 = sshll.u32 %s1, 4
      %s29 = int_to_ptr.hbm [resolvable:$true] %s28
      %s30 = sshll.u32 [#allocation6], 4
      %s31 = int_to_ptr.vmem [resolvable:$true] %s30
      %36 = dma.hbm_to_vmem [thread:$0]  %s29, 8192, %s31, [#allocation7], 256, 256, 16
    $region9: #{linear_block.1} parent=1 // pred_fallthru
      _
    // Predicated region
    $region10: #{linear_block.1} parent=1 // pred_check
      _
    $region11: #{linear_block.1} parent=1 // pred_check_branch
      %38 = sbr.rel (0) target = $region13
    $region12: #{linear_block.1} parent=1 // pred_region
      %40 = vsyncadd [#allocation7], 0
      %s42 = sshll.u32 %s2, 4
      %s43 = int_to_ptr.hbm [resolvable:$true] %s42
      %s44 = sshll.u32 [#allocation8], 4
      %s45 = int_to_ptr.vmem [resolvable:$true] %s44
      %47 = dma.hbm_to_vmem [thread:$0]  %s43, 32, %s45, [#allocation7]
    $region13: #{linear_block.1} parent=1 // pred_fallthru
      _
    // Predicated region
    $region14: #{linear_block.1} parent=1 // pred_check
      _
    $region15: #{linear_block.1} parent=1 // pred_check_branch
      %49 = sbr.rel (0) target = $region17
    $region16: #{linear_block.1} parent=1 // pred_region
      %51 = dma.done [#allocation4], 4096
    $region17: #{linear_block.1} parent=1 // pred_fallthru
      _
    // Predicated region
    $region18: #{linear_block.1} parent=1 // pred_check
      _
    $region19: #{linear_block.1} parent=1 // pred_check_branch
      %53 = sbr.rel (0) target = $region21
    $region20: #{linear_block.1} parent=1 // pred_region
      %55 = dma.done [#allocation7], 8192
    $region21: #{linear_block.1} parent=1 // pred_fallthru
      _
    // Predicated region
    $region22: #{linear_block.1} parent=1 // pred_check
      _
    $region23: #{linear_block.1} parent=1 // pred_check_branch
      %57 = sbr.rel (0) target = $region25
    $region24: #{linear_block.1} parent=1 // pred_region
      %59 = dma.done [#allocation7], 32
    $region25: #{linear_block.1} parent=1 // pred_fallthru
      _
    %p60 = scmp.eq.s32.totalorder 0, 0
    // Predicated region
    $region26: #{linear_block.1} parent=1 // pred_check
      %p61 = pneg %p60
    $region27: #{linear_block.1} parent=1 // pred_check_branch
      %63 = sbr.rel (%p61) target = $region29
    $region28: #{linear_block.1} parent=1 // pred_region
      %64 = vst [vmem:[#allocation2] sm:$0xff] 0.0
      %65 = vst [vmem:[#allocation2 + $0x8] sm:$0xff] 0.0
      %66 = vst [vmem:[#allocation2 + $0x10] sm:$0xff] 0.0
      %67 = vst [vmem:[#allocation2 + $0x18] sm:$0xff] 0.0
      %68 = vst [vmem:[#allocation2 + $0x20] sm:$0xff] 0.0
      %69 = vst [vmem:[#allocation2 + $0x28] sm:$0xff] 0.0
      %70 = vst [vmem:[#allocation2 + $0x30] sm:$0xff] 0.0
      %71 = vst [vmem:[#allocation2 + $0x38] sm:$0xff] 0.0
      %72 = vst [vmem:[#allocation2 + $0x40] sm:$0xff] 0.0
      %73 = vst [vmem:[#allocation2 + $0x48] sm:$0xff] 0.0
      %74 = vst [vmem:[#allocation2 + $0x50] sm:$0xff] 0.0
      %75 = vst [vmem:[#allocation2 + $0x58] sm:$0xff] 0.0
      %76 = vst [vmem:[#allocation2 + $0x60] sm:$0xff] 0.0
      %77 = vst [vmem:[#allocation2 + $0x68] sm:$0xff] 0.0
      %78 = vst [vmem:[#allocation2 + $0x70] sm:$0xff] 0.0
      %79 = vst [vmem:[#allocation2 + $0x78] sm:$0xff] 0.0
      %80 = vst [vmem:[#allocation2 + $0x80] sm:$0xff] 0.0
      %81 = vst [vmem:[#allocation2 + $0x88] sm:$0xff] 0.0
      %82 = vst [vmem:[#allocation2 + $0x90] sm:$0xff] 0.0
      %83 = vst [vmem:[#allocation2 + $0x98] sm:$0xff] 0.0
      %84 = vst [vmem:[#allocation2 + $0xa0] sm:$0xff] 0.0
      %85 = vst [vmem:[#allocation2 + $0xa8] sm:$0xff] 0.0
      %86 = vst [vmem:[#allocation2 + $0xb0] sm:$0xff] 0.0
      %87 = vst [vmem:[#allocation2 + $0xb8] sm:$0xff] 0.0
      %88 = vst [vmem:[#allocation2 + $0xc0] sm:$0xff] 0.0
      %89 = vst [vmem:[#allocation2 + $0xc8] sm:$0xff] 0.0
      %90 = vst [vmem:[#allocation2 + $0xd0] sm:$0xff] 0.0
      %91 = vst [vmem:[#allocation2 + $0xd8] sm:$0xff] 0.0
      %92 = vst [vmem:[#allocation2 + $0xe0] sm:$0xff] 0.0
      %93 = vst [vmem:[#allocation2 + $0xe8] sm:$0xff] 0.0
      %94 = vst [vmem:[#allocation2 + $0xf0] sm:$0xff] 0.0
      %95 = vst [vmem:[#allocation2 + $0xf8] sm:$0xff] 0.0
    $region29: #{linear_block.1} parent=1 // pred_fallthru
      _
    %v96 = vld [vmem:[#allocation2] sm:$0xff]
    %v97 = vld [vmem:[#allocation2 + $0x8] sm:$0xff]
    %v98 = vld [vmem:[#allocation2 + $0x10] sm:$0xff]
    %v99 = vld [vmem:[#allocation2 + $0x18] sm:$0xff]
    %v100 = vld [vmem:[#allocation2 + $0x20] sm:$0xff]
    %v101 = vld [vmem:[#allocation2 + $0x28] sm:$0xff]
    %v102 = vld [vmem:[#allocation2 + $0x30] sm:$0xff]
    %v103 = vld [vmem:[#allocation2 + $0x38] sm:$0xff]
    %v104 = vld [vmem:[#allocation2 + $0x40] sm:$0xff]
    %v105 = vld [vmem:[#allocation2 + $0x48] sm:$0xff]
    %v106 = vld [vmem:[#allocation2 + $0x50] sm:$0xff]
    %v107 = vld [vmem:[#allocation2 + $0x58] sm:$0xff]
    %v108 = vld [vmem:[#allocation2 + $0x60] sm:$0xff]
    %v109 = vld [vmem:[#allocation2 + $0x68] sm:$0xff]
    %v110 = vld [vmem:[#allocation2 + $0x70] sm:$0xff]
    %v111 = vld [vmem:[#allocation2 + $0x78] sm:$0xff]
    %v112 = vld [vmem:[#allocation2 + $0x80] sm:$0xff]
    %v113 = vld [vmem:[#allocation2 + $0x88] sm:$0xff]
    %v114 = vld [vmem:[#allocation2 + $0x90] sm:$0xff]
    %v115 = vld [vmem:[#allocation2 + $0x98] sm:$0xff]
    %v116 = vld [vmem:[#allocation2 + $0xa0] sm:$0xff]
    %v117 = vld [vmem:[#allocation2 + $0xa8] sm:$0xff]
    %v118 = vld [vmem:[#allocation2 + $0xb0] sm:$0xff]
    %v119 = vld [vmem:[#allocation2 + $0xb8] sm:$0xff]
    %v120 = vld [vmem:[#allocation2 + $0xc0] sm:$0xff]
    %v121 = vld [vmem:[#allocation2 + $0xc8] sm:$0xff]
    %v122 = vld [vmem:[#allocation2 + $0xd0] sm:$0xff]
    %v123 = vld [vmem:[#allocation2 + $0xd8] sm:$0xff]
    %v124 = vld [vmem:[#allocation2 + $0xe0] sm:$0xff]
    %v125 = vld [vmem:[#allocation2 + $0xe8] sm:$0xff]
    %v126 = vld [vmem:[#allocation2 + $0xf0] sm:$0xff]
    %v127 = vld [vmem:[#allocation2 + $0xf8] sm:$0xff]
    %v128 = vld [vmem:[#allocation3] sm:$0xff]
    %v129 = vld [vmem:[#allocation3 + $0x8] sm:$0xff]
    %v130 = vld [vmem:[#allocation3 + $0x10] sm:$0xff]
    %v131 = vld [vmem:[#allocation3 + $0x18] sm:$0xff]
    %v132 = vld [vmem:[#allocation3 + $0x20] sm:$0xff]
    %v133 = vld [vmem:[#allocation3 + $0x28] sm:$0xff]
    %v134 = vld [vmem:[#allocation3 + $0x30] sm:$0xff]
    %v135 = vld [vmem:[#allocation3 + $0x38] sm:$0xff]
    %v136 = vld [vmem:[#allocation3 + $0x40] sm:$0xff]
    %v137 = vld [vmem:[#allocation3 + $0x48] sm:$0xff]
    %v138 = vld [vmem:[#allocation3 + $0x50] sm:$0xff]
    %v139 = vld [vmem:[#allocation3 + $0x58] sm:$0xff]
    %v140 = vld [vmem:[#allocation3 + $0x60] sm:$0xff]
    %v141 = vld [vmem:[#allocation3 + $0x68] sm:$0xff]
    %v142 = vld [vmem:[#allocation3 + $0x70] sm:$0xff]
    %v143 = vld [vmem:[#allocation3 + $0x78] sm:$0xff]
    %v144 = vld [vmem:[#allocation3 + $0x80] sm:$0xff]
    %v145 = vld [vmem:[#allocation3 + $0x88] sm:$0xff]
    %v146 = vld [vmem:[#allocation3 + $0x90] sm:$0xff]
    %v147 = vld [vmem:[#allocation3 + $0x98] sm:$0xff]
    %v148 = vld [vmem:[#allocation3 + $0xa0] sm:$0xff]
    %v149 = vld [vmem:[#allocation3 + $0xa8] sm:$0xff]
    %v150 = vld [vmem:[#allocation3 + $0xb0] sm:$0xff]
    %v151 = vld [vmem:[#allocation3 + $0xb8] sm:$0xff]
    %v152 = vld [vmem:[#allocation3 + $0xc0] sm:$0xff]
    %v153 = vld [vmem:[#allocation3 + $0xc8] sm:$0xff]
    %v154 = vld [vmem:[#allocation3 + $0xd0] sm:$0xff]
    %v155 = vld [vmem:[#allocation3 + $0xd8] sm:$0xff]
    %v156 = vld [vmem:[#allocation3 + $0xe0] sm:$0xff]
    %v157 = vld [vmem:[#allocation3 + $0xe8] sm:$0xff]
    %v158 = vld [vmem:[#allocation3 + $0xf0] sm:$0xff]
    %v159 = vld [vmem:[#allocation3 + $0xf8] sm:$0xff]
    %v160 = vld [vmem:[#allocation6] sm:$0xff]
    %v161 = vld [vmem:[#allocation6 + $0x8] sm:$0xff]
    %v162 = vld [vmem:[#allocation6 + $0x10] sm:$0xff]
    %v163 = vld [vmem:[#allocation6 + $0x18] sm:$0xff]
    %v164 = vld [vmem:[#allocation6 + $0x20] sm:$0xff]
    %v165 = vld [vmem:[#allocation6 + $0x28] sm:$0xff]
    %v166 = vld [vmem:[#allocation6 + $0x30] sm:$0xff]
    %v167 = vld [vmem:[#allocation6 + $0x38] sm:$0xff]
    %v168 = vld [vmem:[#allocation6 + $0x40] sm:$0xff]
    %v169 = vld [vmem:[#allocation6 + $0x48] sm:$0xff]
    %v170 = vld [vmem:[#allocation6 + $0x50] sm:$0xff]
    %v171 = vld [vmem:[#allocation6 + $0x58] sm:$0xff]
    %v172 = vld [vmem:[#allocation6 + $0x60] sm:$0xff]
    %v173 = vld [vmem:[#allocation6 + $0x68] sm:$0xff]
    %v174 = vld [vmem:[#allocation6 + $0x70] sm:$0xff]
    %v175 = vld [vmem:[#allocation6 + $0x78] sm:$0xff]
    %v176 = vld [vmem:[#allocation6 + $0x80] sm:$0xff]
    %v177 = vld [vmem:[#allocation6 + $0x88] sm:$0xff]
    %v178 = vld [vmem:[#allocation6 + $0x90] sm:$0xff]
    %v179 = vld [vmem:[#allocation6 + $0x98] sm:$0xff]
    %v180 = vld [vmem:[#allocation6 + $0xa0] sm:$0xff]
    %v181 = vld [vmem:[#allocation6 + $0xa8] sm:$0xff]
    %v182 = vld [vmem:[#allocation6 + $0xb0] sm:$0xff]
    %v183 = vld [vmem:[#allocation6 + $0xb8] sm:$0xff]
    %v184 = vld [vmem:[#allocation6 + $0xc0] sm:$0xff]
    %v185 = vld [vmem:[#allocation6 + $0xc8] sm:$0xff]
    %v186 = vld [vmem:[#allocation6 + $0xd0] sm:$0xff]
    %v187 = vld [vmem:[#allocation6 + $0xd8] sm:$0xff]
    %v188 = vld [vmem:[#allocation6 + $0xe0] sm:$0xff]
    %v189 = vld [vmem:[#allocation6 + $0xe8] sm:$0xff]
    %v190 = vld [vmem:[#allocation6 + $0xf0] sm:$0xff]
    %v191 = vld [vmem:[#allocation6 + $0xf8] sm:$0xff]
    %v192 = vld [vmem:[#allocation6 + $0x100] sm:$0xff]
    %v193 = vld [vmem:[#allocation6 + $0x108] sm:$0xff]
    %v194 = vld [vmem:[#allocation6 + $0x110] sm:$0xff]
    %v195 = vld [vmem:[#allocation6 + $0x118] sm:$0xff]
    %v196 = vld [vmem:[#allocation6 + $0x120] sm:$0xff]
    %v197 = vld [vmem:[#allocation6 + $0x128] sm:$0xff]
    %v198 = vld [vmem:[#allocation6 + $0x130] sm:$0xff]
    %v199 = vld [vmem:[#allocation6 + $0x138] sm:$0xff]
    %v200 = vld [vmem:[#allocation6 + $0x140] sm:$0xff]
    %v201 = vld [vmem:[#allocation6 + $0x148] sm:$0xff]
    %v202 = vld [vmem:[#allocation6 + $0x150] sm:$0xff]
    %v203 = vld [vmem:[#allocation6 + $0x158] sm:$0xff]
    %v204 = vld [vmem:[#allocation6 + $0x160] sm:$0xff]
    %v205 = vld [vmem:[#allocation6 + $0x168] sm:$0xff]
    %v206 = vld [vmem:[#allocation6 + $0x170] sm:$0xff]
    %v207 = vld [vmem:[#allocation6 + $0x178] sm:$0xff]
    %v208 = vld [vmem:[#allocation6 + $0x180] sm:$0xff]
    %v209 = vld [vmem:[#allocation6 + $0x188] sm:$0xff]
    %v210 = vld [vmem:[#allocation6 + $0x190] sm:$0xff]
    %v211 = vld [vmem:[#allocation6 + $0x198] sm:$0xff]
    %v212 = vld [vmem:[#allocation6 + $0x1a0] sm:$0xff]
    %v213 = vld [vmem:[#allocation6 + $0x1a8] sm:$0xff]
    %v214 = vld [vmem:[#allocation6 + $0x1b0] sm:$0xff]
    %v215 = vld [vmem:[#allocation6 + $0x1b8] sm:$0xff]
    %v216 = vld [vmem:[#allocation6 + $0x1c0] sm:$0xff]
    %v217 = vld [vmem:[#allocation6 + $0x1c8] sm:$0xff]
    %v218 = vld [vmem:[#allocation6 + $0x1d0] sm:$0xff]
    %v219 = vld [vmem:[#allocation6 + $0x1d8] sm:$0xff]
    %v220 = vld [vmem:[#allocation6 + $0x1e0] sm:$0xff]
    %v221 = vld [vmem:[#allocation6 + $0x1e8] sm:$0xff]
    %v222 = vld [vmem:[#allocation6 + $0x1f0] sm:$0xff]
    %v223 = vld [vmem:[#allocation6 + $0x1f8] sm:$0xff]
    %224 = vmatpush.msra.mxu0 %v190
    %225 = vmatpush.msra.mxu0 %v188
    %226 = vmatpush.msra.mxu0 %v186
    %227 = vmatpush.msra.mxu0 %v184
    %228 = vmatpush.msra.mxu0 %v182
    %229 = vmatpush.msra.mxu0 %v180
    %230 = vmatpush.msra.mxu0 %v178
    %231 = vmatpush.msra.mxu0 %v176
    %232 = vmatpush.msra.mxu0 %v174
    %233 = vmatpush.msra.mxu0 %v172
    %234 = vmatpush.msra.mxu0 %v170
    %235 = vmatpush.msra.mxu0 %v168
    %236 = vmatpush.msra.mxu0 %v166
    %237 = vmatpush.msra.mxu0 %v164
    %238 = vmatpush.msra.mxu0 %v162
    %239 = vmatpush.msra.mxu0 %v160
    %240 = vmatmul.f32.gmra.mxu0 %v128
    %v241 = vpop.f32.mrf.mxu0
    %v242 = vadd.f32 0.0, %v241
    %243 = vmatmul.f32.gmra.mxu0 %v130
    %v244 = vpop.f32.mrf.mxu0
    %v245 = vadd.f32 0.0, %v244
    %246 = vmatmul.f32.gmra.mxu0 %v132
    %v247 = vpop.f32.mrf.mxu0
    %v248 = vadd.f32 0.0, %v247
    %249 = vmatmul.f32.gmra.mxu0 %v134
    %v250 = vpop.f32.mrf.mxu0
    %v251 = vadd.f32 0.0, %v250
    %252 = vmatmul.f32.gmra.mxu0 %v136
    %v253 = vpop.f32.mrf.mxu0
    %v254 = vadd.f32 0.0, %v253
    %255 = vmatmul.f32.gmra.mxu0 %v138
    %v256 = vpop.f32.mrf.mxu0
    %v257 = vadd.f32 0.0, %v256
    %258 = vmatmul.f32.gmra.mxu0 %v140
    %v259 = vpop.f32.mrf.mxu0
    %v260 = vadd.f32 0.0, %v259
    %261 = vmatmul.f32.gmra.mxu0 %v142
    %v262 = vpop.f32.mrf.mxu0
    %v263 = vadd.f32 0.0, %v262
    %264 = vmatmul.f32.gmra.mxu0 %v144
    %v265 = vpop.f32.mrf.mxu0
    %v266 = vadd.f32 0.0, %v265
    %267 = vmatmul.f32.gmra.mxu0 %v146
    %v268 = vpop.f32.mrf.mxu0
    %v269 = vadd.f32 0.0, %v268
    %270 = vmatmul.f32.gmra.mxu0 %v148
    %v271 = vpop.f32.mrf.mxu0
    %v272 = vadd.f32 0.0, %v271
    %273 = vmatmul.f32.gmra.mxu0 %v150
    %v274 = vpop.f32.mrf.mxu0
    %v275 = vadd.f32 0.0, %v274
    %276 = vmatmul.f32.gmra.mxu0 %v152
    %v277 = vpop.f32.mrf.mxu0
    %v278 = vadd.f32 0.0, %v277
    %279 = vmatmul.f32.gmra.mxu0 %v154
    %v280 = vpop.f32.mrf.mxu0
    %v281 = vadd.f32 0.0, %v280
    %282 = vmatmul.f32.gmra.mxu0 %v156
    %v283 = vpop.f32.mrf.mxu0
    %v284 = vadd.f32 0.0, %v283
    %285 = vmatmul.f32.gmra.mxu0 %v158
    %v286 = vpop.f32.mrf.mxu0
    %v287 = vadd.f32 0.0, %v286
    %288 = vdwg.mxu0
    %289 = vmatpush.msra.mxu0 %v222
    %290 = vmatpush.msra.mxu0 %v220
    %291 = vmatpush.msra.mxu0 %v218
    %292 = vmatpush.msra.mxu0 %v216
    %293 = vmatpush.msra.mxu0 %v214
    %294 = vmatpush.msra.mxu0 %v212
    %295 = vmatpush.msra.mxu0 %v210
    %296 = vmatpush.msra.mxu0 %v208
    %297 = vmatpush.msra.mxu0 %v206
    %298 = vmatpush.msra.mxu0 %v204
    %299 = vmatpush.msra.mxu0 %v202
    %300 = vmatpush.msra.mxu0 %v200
    %301 = vmatpush.msra.mxu0 %v198
    %302 = vmatpush.msra.mxu0 %v196
    %303 = vmatpush.msra.mxu0 %v194
    %304 = vmatpush.msra.mxu0 %v192
    %305 = vmatmul.f32.gmra.mxu0 %v129
    %v306 = vpop.f32.mrf.mxu0
    %v307 = vadd.f32 %v242, %v306
    %308 = vmatmul.f32.gmra.mxu0 %v131
    %v309 = vpop.f32.mrf.mxu0
    %v310 = vadd.f32 %v245, %v309
    %311 = vmatmul.f32.gmra.mxu0 %v133
    %v312 = vpop.f32.mrf.mxu0
    %v313 = vadd.f32 %v248, %v312
    %314 = vmatmul.f32.gmra.mxu0 %v135
    %v315 = vpop.f32.mrf.mxu0
    %v316 = vadd.f32 %v251, %v315
    %317 = vmatmul.f32.gmra.mxu0 %v137
    %v318 = vpop.f32.mrf.mxu0
    %v319 = vadd.f32 %v254, %v318
    %320 = vmatmul.f32.gmra.mxu0 %v139
    %v321 = vpop.f32.mrf.mxu0
    %v322 = vadd.f32 %v257, %v321
    %323 = vmatmul.f32.gmra.mxu0 %v141
    %v324 = vpop.f32.mrf.mxu0
    %v325 = vadd.f32 %v260, %v324
    %326 = vmatmul.f32.gmra.mxu0 %v143
    %v327 = vpop.f32.mrf.mxu0
    %v328 = vadd.f32 %v263, %v327
    %329 = vmatmul.f32.gmra.mxu0 %v145
    %v330 = vpop.f32.mrf.mxu0
    %v331 = vadd.f32 %v266, %v330
    %332 = vmatmul.f32.gmra.mxu0 %v147
    %v333 = vpop.f32.mrf.mxu0
    %v334 = vadd.f32 %v269, %v333
    %335 = vmatmul.f32.gmra.mxu0 %v149
    %v336 = vpop.f32.mrf.mxu0
    %v337 = vadd.f32 %v272, %v336
    %338 = vmatmul.f32.gmra.mxu0 %v151
    %v339 = vpop.f32.mrf.mxu0
    %v340 = vadd.f32 %v275, %v339
    %341 = vmatmul.f32.gmra.mxu0 %v153
    %v342 = vpop.f32.mrf.mxu0
    %v343 = vadd.f32 %v278, %v342
    %344 = vmatmul.f32.gmra.mxu0 %v155
    %v345 = vpop.f32.mrf.mxu0
    %v346 = vadd.f32 %v281, %v345
    %347 = vmatmul.f32.gmra.mxu0 %v157
    %v348 = vpop.f32.mrf.mxu0
    %v349 = vadd.f32 %v284, %v348
    %350 = vmatmul.f32.gmra.mxu0 %v159
    %v351 = vpop.f32.mrf.mxu0
    %v352 = vadd.f32 %v287, %v351
    %353 = vdwg.mxu0
    %354 = vmatpush.msra.mxu0 %v191
    %355 = vmatpush.msra.mxu0 %v189
    %356 = vmatpush.msra.mxu0 %v187
    %357 = vmatpush.msra.mxu0 %v185
    %358 = vmatpush.msra.mxu0 %v183
    %359 = vmatpush.msra.mxu0 %v181
    %360 = vmatpush.msra.mxu0 %v179
    %361 = vmatpush.msra.mxu0 %v177
    %362 = vmatpush.msra.mxu0 %v175
    %363 = vmatpush.msra.mxu0 %v173
    %364 = vmatpush.msra.mxu0 %v171
    %365 = vmatpush.msra.mxu0 %v169
    %366 = vmatpush.msra.mxu0 %v167
    %367 = vmatpush.msra.mxu0 %v165
    %368 = vmatpush.msra.mxu0 %v163
    %369 = vmatpush.msra.mxu0 %v161
    %370 = vmatmul.f32.gmra.mxu0 %v128
    %v371 = vpop.f32.mrf.mxu0
    %v372 = vadd.f32 0.0, %v371
    %373 = vmatmul.f32.gmra.mxu0 %v130
    %v374 = vpop.f32.mrf.mxu0
    %v375 = vadd.f32 0.0, %v374
    %376 = vmatmul.f32.gmra.mxu0 %v132
    %v377 = vpop.f32.mrf.mxu0
    %v378 = vadd.f32 0.0, %v377
    %379 = vmatmul.f32.gmra.mxu0 %v134
    %v380 = vpop.f32.mrf.mxu0
    %v381 = vadd.f32 0.0, %v380
    %382 = vmatmul.f32.gmra.mxu0 %v136
    %v383 = vpop.f32.mrf.mxu0
    %v384 = vadd.f32 0.0, %v383
    %385 = vmatmul.f32.gmra.mxu0 %v138
    %v386 = vpop.f32.mrf.mxu0
    %v387 = vadd.f32 0.0, %v386
    %388 = vmatmul.f32.gmra.mxu0 %v140
    %v389 = vpop.f32.mrf.mxu0
    %v390 = vadd.f32 0.0, %v389
    %391 = vmatmul.f32.gmra.mxu0 %v142
    %v392 = vpop.f32.mrf.mxu0
    %v393 = vadd.f32 0.0, %v392
    %394 = vmatmul.f32.gmra.mxu0 %v144
    %v395 = vpop.f32.mrf.mxu0
    %v396 = vadd.f32 0.0, %v395
    %397 = vmatmul.f32.gmra.mxu0 %v146
    %v398 = vpop.f32.mrf.mxu0
    %v399 = vadd.f32 0.0, %v398
    %400 = vmatmul.f32.gmra.mxu0 %v148
    %v401 = vpop.f32.mrf.mxu0
    %v402 = vadd.f32 0.0, %v401
    %403 = vmatmul.f32.gmra.mxu0 %v150
    %v404 = vpop.f32.mrf.mxu0
    %v405 = vadd.f32 0.0, %v404
    %406 = vmatmul.f32.gmra.mxu0 %v152
    %v407 = vpop.f32.mrf.mxu0
    %v408 = vadd.f32 0.0, %v407
    %409 = vmatmul.f32.gmra.mxu0 %v154
    %v410 = vpop.f32.mrf.mxu0
    %v411 = vadd.f32 0.0, %v410
    %412 = vmatmul.f32.gmra.mxu0 %v156
    %v413 = vpop.f32.mrf.mxu0
    %v414 = vadd.f32 0.0, %v413
    %415 = vmatmul.f32.gmra.mxu0 %v158
    %v416 = vpop.f32.mrf.mxu0
    %v417 = vadd.f32 0.0, %v416
    %418 = vdwg.mxu0
    %419 = vmatpush.msra.mxu0 %v223
    %420 = vmatpush.msra.mxu0 %v221
    %421 = vmatpush.msra.mxu0 %v219
    %422 = vmatpush.msra.mxu0 %v217
    %423 = vmatpush.msra.mxu0 %v215
    %424 = vmatpush.msra.mxu0 %v213
    %425 = vmatpush.msra.mxu0 %v211
    %426 = vmatpush.msra.mxu0 %v209
    %427 = vmatpush.msra.mxu0 %v207
    %428 = vmatpush.msra.mxu0 %v205
    %429 = vmatpush.msra.mxu0 %v203
    %430 = vmatpush.msra.mxu0 %v201
    %431 = vmatpush.msra.mxu0 %v199
    %432 = vmatpush.msra.mxu0 %v197
    %433 = vmatpush.msra.mxu0 %v195
    %434 = vmatpush.msra.mxu0 %v193
    %435 = vmatmul.f32.gmra.mxu0 %v129
    %v436 = vpop.f32.mrf.mxu0
    %v437 = vadd.f32 %v372, %v436
    %438 = vmatmul.f32.gmra.mxu0 %v131
    %v439 = vpop.f32.mrf.mxu0
    %v440 = vadd.f32 %v375, %v439
    %441 = vmatmul.f32.gmra.mxu0 %v133
    %v442 = vpop.f32.mrf.mxu0
    %v443 = vadd.f32 %v378, %v442
    %444 = vmatmul.f32.gmra.mxu0 %v135
    %v445 = vpop.f32.mrf.mxu0
    %v446 = vadd.f32 %v381, %v445
    %447 = vmatmul.f32.gmra.mxu0 %v137
    %v448 = vpop.f32.mrf.mxu0
    %v449 = vadd.f32 %v384, %v448
    %450 = vmatmul.f32.gmra.mxu0 %v139
    %v451 = vpop.f32.mrf.mxu0
    %v452 = vadd.f32 %v387, %v451
    %453 = vmatmul.f32.gmra.mxu0 %v141
    %v454 = vpop.f32.mrf.mxu0
    %v455 = vadd.f32 %v390, %v454
    %456 = vmatmul.f32.gmra.mxu0 %v143
    %v457 = vpop.f32.mrf.mxu0
    %v458 = vadd.f32 %v393, %v457
    %459 = vmatmul.f32.gmra.mxu0 %v145
    %v460 = vpop.f32.mrf.mxu0
    %v461 = vadd.f32 %v396, %v460
    %462 = vmatmul.f32.gmra.mxu0 %v147
    %v463 = vpop.f32.mrf.mxu0
    %v464 = vadd.f32 %v399, %v463
    %465 = vmatmul.f32.gmra.mxu0 %v149
    %v466 = vpop.f32.mrf.mxu0
    %v467 = vadd.f32 %v402, %v466
    %468 = vmatmul.f32.gmra.mxu0 %v151
    %v469 = vpop.f32.mrf.mxu0
    %v470 = vadd.f32 %v405, %v469
    %471 = vmatmul.f32.gmra.mxu0 %v153
    %v472 = vpop.f32.mrf.mxu0
    %v473 = vadd.f32 %v408, %v472
    %474 = vmatmul.f32.gmra.mxu0 %v155
    %v475 = vpop.f32.mrf.mxu0
    %v476 = vadd.f32 %v411, %v475
    %477 = vmatmul.f32.gmra.mxu0 %v157
    %v478 = vpop.f32.mrf.mxu0
    %v479 = vadd.f32 %v414, %v478
    %480 = vmatmul.f32.gmra.mxu0 %v159
    %v481 = vpop.f32.mrf.mxu0
    %v482 = vadd.f32 %v417, %v481
    %483 = vdwg.mxu0
    %v484 = vadd.f32 %v96, %v307
    %v485 = vadd.f32 %v97, %v437
    %v486 = vadd.f32 %v98, %v310
    %v487 = vadd.f32 %v99, %v440
    %v488 = vadd.f32 %v100, %v313
    %v489 = vadd.f32 %v101, %v443
    %v490 = vadd.f32 %v102, %v316
    %v491 = vadd.f32 %v103, %v446
    %v492 = vadd.f32 %v104, %v319
    %v493 = vadd.f32 %v105, %v449
    %v494 = vadd.f32 %v106, %v322
    %v495 = vadd.f32 %v107, %v452
    %v496 = vadd.f32 %v108, %v325
    %v497 = vadd.f32 %v109, %v455
    %v498 = vadd.f32 %v110, %v328
    %v499 = vadd.f32 %v111, %v458
    %v500 = vadd.f32 %v112, %v331
    %v501 = vadd.f32 %v113, %v461
    %v502 = vadd.f32 %v114, %v334
    %v503 = vadd.f32 %v115, %v464
    %v504 = vadd.f32 %v116, %v337
    %v505 = vadd.f32 %v117, %v467
    %v506 = vadd.f32 %v118, %v340
    %v507 = vadd.f32 %v119, %v470
    %v508 = vadd.f32 %v120, %v343
    %v509 = vadd.f32 %v121, %v473
    %v510 = vadd.f32 %v122, %v346
    %v511 = vadd.f32 %v123, %v476
    %v512 = vadd.f32 %v124, %v349
    %v513 = vadd.f32 %v125, %v479
    %v514 = vadd.f32 %v126, %v352
    %v515 = vadd.f32 %v127, %v482
    %516 = vst [vmem:[#allocation2] sm:$0xff] %v484
    %517 = vst [vmem:[#allocation2 + $0x8] sm:$0xff] %v485
    %518 = vst [vmem:[#allocation2 + $0x10] sm:$0xff] %v486
    %519 = vst [vmem:[#allocation2 + $0x18] sm:$0xff] %v487
    %520 = vst [vmem:[#allocation2 + $0x20] sm:$0xff] %v488
    %521 = vst [vmem:[#allocation2 + $0x28] sm:$0xff] %v489
    %522 = vst [vmem:[#allocation2 + $0x30] sm:$0xff] %v490
    %523 = vst [vmem:[#allocation2 + $0x38] sm:$0xff] %v491
    %524 = vst [vmem:[#allocation2 + $0x40] sm:$0xff] %v492
    %525 = vst [vmem:[#allocation2 + $0x48] sm:$0xff] %v493
    %526 = vst [vmem:[#allocation2 + $0x50] sm:$0xff] %v494
    %527 = vst [vmem:[#allocation2 + $0x58] sm:$0xff] %v495
    %528 = vst [vmem:[#allocation2 + $0x60] sm:$0xff] %v496
    %529 = vst [vmem:[#allocation2 + $0x68] sm:$0xff] %v497
    %530 = vst [vmem:[#allocation2 + $0x70] sm:$0xff] %v498
    %531 = vst [vmem:[#allocation2 + $0x78] sm:$0xff] %v499
    %532 = vst [vmem:[#allocation2 + $0x80] sm:$0xff] %v500
    %533 = vst [vmem:[#allocation2 + $0x88] sm:$0xff] %v501
    %534 = vst [vmem:[#allocation2 + $0x90] sm:$0xff] %v502
    %535 = vst [vmem:[#allocation2 + $0x98] sm:$0xff] %v503
    %536 = vst [vmem:[#allocation2 + $0xa0] sm:$0xff] %v504
    %537 = vst [vmem:[#allocation2 + $0xa8] sm:$0xff] %v505
    %538 = vst [vmem:[#allocation2 + $0xb0] sm:$0xff] %v506
    %539 = vst [vmem:[#allocation2 + $0xb8] sm:$0xff] %v507
    %540 = vst [vmem:[#allocation2 + $0xc0] sm:$0xff] %v508
    %541 = vst [vmem:[#allocation2 + $0xc8] sm:$0xff] %v509
    %542 = vst [vmem:[#allocation2 + $0xd0] sm:$0xff] %v510
    %543 = vst [vmem:[#allocation2 + $0xd8] sm:$0xff] %v511
    %544 = vst [vmem:[#allocation2 + $0xe0] sm:$0xff] %v512
    %545 = vst [vmem:[#allocation2 + $0xe8] sm:$0xff] %v513
    %546 = vst [vmem:[#allocation2 + $0xf0] sm:$0xff] %v514
    %547 = vst [vmem:[#allocation2 + $0xf8] sm:$0xff] %v515
    // Predicated region
    $region30: #{linear_block.1} parent=1 // pred_check
      %p548 = pneg %p60
    $region31: #{linear_block.1} parent=1 // pred_check_branch
      %550 = sbr.rel (%p548) target = $region33
    $region32: #{linear_block.1} parent=1 // pred_region
      %v551 = vld [vmem:[#allocation2] sm:$0xff]
      %v552 = vld [vmem:[#allocation2 + $0x8] sm:$0xff]
      %v553 = vld [vmem:[#allocation2 + $0x10] sm:$0xff]
      %v554 = vld [vmem:[#allocation2 + $0x18] sm:$0xff]
      %v555 = vld [vmem:[#allocation2 + $0x20] sm:$0xff]
      %v556 = vld [vmem:[#allocation2 + $0x28] sm:$0xff]
      %v557 = vld [vmem:[#allocation2 + $0x30] sm:$0xff]
      %v558 = vld [vmem:[#allocation2 + $0x38] sm:$0xff]
      %v559 = vld [vmem:[#allocation2 + $0x40] sm:$0xff]
      %v560 = vld [vmem:[#allocation2 + $0x48] sm:$0xff]
      %v561 = vld [vmem:[#allocation2 + $0x50] sm:$0xff]
      %v562 = vld [vmem:[#allocation2 + $0x58] sm:$0xff]
      %v563 = vld [vmem:[#allocation2 + $0x60] sm:$0xff]
      %v564 = vld [vmem:[#allocation2 + $0x68] sm:$0xff]
      %v565 = vld [vmem:[#allocation2 + $0x70] sm:$0xff]
      %v566 = vld [vmem:[#allocation2 + $0x78] sm:$0xff]
      %v567 = vld [vmem:[#allocation2 + $0x80] sm:$0xff]
      %v568 = vld [vmem:[#allocation2 + $0x88] sm:$0xff]
      %v569 = vld [vmem:[#allocation2 + $0x90] sm:$0xff]
      %v570 = vld [vmem:[#allocation2 + $0x98] sm:$0xff]
      %v571 = vld [vmem:[#allocation2 + $0xa0] sm:$0xff]
      %v572 = vld [vmem:[#allocation2 + $0xa8] sm:$0xff]
      %v573 = vld [vmem:[#allocation2 + $0xb0] sm:$0xff]
      %v574 = vld [vmem:[#allocation2 + $0xb8] sm:$0xff]
      %v575 = vld [vmem:[#allocation2 + $0xc0] sm:$0xff]
      %v576 = vld [vmem:[#allocation2 + $0xc8] sm:$0xff]
      %v577 = vld [vmem:[#allocation2 + $0xd0] sm:$0xff]
      %v578 = vld [vmem:[#allocation2 + $0xd8] sm:$0xff]
      %v579 = vld [vmem:[#allocation2 + $0xe0] sm:$0xff]
      %v580 = vld [vmem:[#allocation2 + $0xe8] sm:$0xff]
      %v581 = vld [vmem:[#allocation2 + $0xf0] sm:$0xff]
      %v582 = vld [vmem:[#allocation2 + $0xf8] sm:$0xff]
      %v583 = vld [vmem:[#allocation8] sm:$0x3]
      %v585 = vperm.slane %v583, 0
      %v586 = vperm.slane %v583, 1
      %v589 = vadd.f32 %v551, %v585
      %v590 = vadd.f32 %v552, %v586
      %v591 = vadd.f32 %v553, %v585
      %v592 = vadd.f32 %v554, %v586
      %v593 = vadd.f32 %v555, %v585
      %v594 = vadd.f32 %v556, %v586
      %v595 = vadd.f32 %v557, %v585
      %v596 = vadd.f32 %v558, %v586
      %v597 = vadd.f32 %v559, %v585
      %v598 = vadd.f32 %v560, %v586
      %v599 = vadd.f32 %v561, %v585
      %v600 = vadd.f32 %v562, %v586
      %v601 = vadd.f32 %v563, %v585
      %v602 = vadd.f32 %v564, %v586
      %v603 = vadd.f32 %v565, %v585
      %v604 = vadd.f32 %v566, %v586
      %v605 = vadd.f32 %v567, %v585
      %v606 = vadd.f32 %v568, %v586
      %v607 = vadd.f32 %v569, %v585
      %v608 = vadd.f32 %v570, %v586
      %v609 = vadd.f32 %v571, %v585
      %v610 = vadd.f32 %v572, %v586
      %v611 = vadd.f32 %v573, %v585
      %v612 = vadd.f32 %v574, %v586
      %v613 = vadd.f32 %v575, %v585
      %v614 = vadd.f32 %v576, %v586
      %v615 = vadd.f32 %v577, %v585
      %v616 = vadd.f32 %v578, %v586
      %v617 = vadd.f32 %v579, %v585
      %v618 = vadd.f32 %v580, %v586
      %v619 = vadd.f32 %v581, %v585
      %v620 = vadd.f32 %v582, %v586
      %vm621 = vcmp.gt.f32.partialorder %v589, 0.0
      %vm622 = vcmp.gt.f32.partialorder %v590, 0.0
      %vm623 = vcmp.gt.f32.partialorder %v591, 0.0
      %vm624 = vcmp.gt.f32.partialorder %v592, 0.0
      %vm625 = vcmp.gt.f32.partialorder %v593, 0.0
      %vm626 = vcmp.gt.f32.partialorder %v594, 0.0
      %vm627 = vcmp.gt.f32.partialorder %v595, 0.0
      %vm628 = vcmp.gt.f32.partialorder %v596, 0.0
      %vm629 = vcmp.gt.f32.partialorder %v597, 0.0
      %vm630 = vcmp.gt.f32.partialorder %v598, 0.0
      %vm631 = vcmp.gt.f32.partialorder %v599, 0.0
      %vm632 = vcmp.gt.f32.partialorder %v600, 0.0
      %vm633 = vcmp.gt.f32.partialorder %v601, 0.0
      %vm634 = vcmp.gt.f32.partialorder %v602, 0.0
      %vm635 = vcmp.gt.f32.partialorder %v603, 0.0
      %vm636 = vcmp.gt.f32.partialorder %v604, 0.0
      %vm637 = vcmp.gt.f32.partialorder %v605, 0.0
      %vm638 = vcmp.gt.f32.partialorder %v606, 0.0
      %vm639 = vcmp.gt.f32.partialorder %v607, 0.0
      %vm640 = vcmp.gt.f32.partialorder %v608, 0.0
      %vm641 = vcmp.gt.f32.partialorder %v609, 0.0
      %vm642 = vcmp.gt.f32.partialorder %v610, 0.0
      %vm643 = vcmp.gt.f32.partialorder %v611, 0.0
      %vm644 = vcmp.gt.f32.partialorder %v612, 0.0
      %vm645 = vcmp.gt.f32.partialorder %v613, 0.0
      %vm646 = vcmp.gt.f32.partialorder %v614, 0.0
      %vm647 = vcmp.gt.f32.partialorder %v615, 0.0
      %vm648 = vcmp.gt.f32.partialorder %v616, 0.0
      %vm649 = vcmp.gt.f32.partialorder %v617, 0.0
      %vm650 = vcmp.gt.f32.partialorder %v618, 0.0
      %vm651 = vcmp.gt.f32.partialorder %v619, 0.0
      %vm652 = vcmp.gt.f32.partialorder %v620, 0.0
      %v653 = vmul.f32 %v589, 0.01
      %v654 = vmul.f32 %v590, 0.01
      %v655 = vmul.f32 %v591, 0.01
      %v656 = vmul.f32 %v592, 0.01
      %v657 = vmul.f32 %v593, 0.01
      %v658 = vmul.f32 %v594, 0.01
      %v659 = vmul.f32 %v595, 0.01
      %v660 = vmul.f32 %v596, 0.01
      %v661 = vmul.f32 %v597, 0.01
      %v662 = vmul.f32 %v598, 0.01
      %v663 = vmul.f32 %v599, 0.01
      %v664 = vmul.f32 %v600, 0.01
      %v665 = vmul.f32 %v601, 0.01
      %v666 = vmul.f32 %v602, 0.01
      %v667 = vmul.f32 %v603, 0.01
      %v668 = vmul.f32 %v604, 0.01
      %v669 = vmul.f32 %v605, 0.01
      %v670 = vmul.f32 %v606, 0.01
      %v671 = vmul.f32 %v607, 0.01
      %v672 = vmul.f32 %v608, 0.01
      %v673 = vmul.f32 %v609, 0.01
      %v674 = vmul.f32 %v610, 0.01
      %v675 = vmul.f32 %v611, 0.01
      %v676 = vmul.f32 %v612, 0.01
      %v677 = vmul.f32 %v613, 0.01
      %v678 = vmul.f32 %v614, 0.01
      %v679 = vmul.f32 %v615, 0.01
      %v680 = vmul.f32 %v616, 0.01
      %v681 = vmul.f32 %v617, 0.01
      %v682 = vmul.f32 %v618, 0.01
      %v683 = vmul.f32 %v619, 0.01
      %v684 = vmul.f32 %v620, 0.01
      %v685 = vsel %vm621, %v589, %v653
      %v686 = vsel %vm622, %v590, %v654
      %v687 = vsel %vm623, %v591, %v655
      %v688 = vsel %vm624, %v592, %v656
      %v689 = vsel %vm625, %v593, %v657
      %v690 = vsel %vm626, %v594, %v658
      %v691 = vsel %vm627, %v595, %v659
      %v692 = vsel %vm628, %v596, %v660
      %v693 = vsel %vm629, %v597, %v661
      %v694 = vsel %vm630, %v598, %v662
      %v695 = vsel %vm631, %v599, %v663
      %v696 = vsel %vm632, %v600, %v664
      %v697 = vsel %vm633, %v601, %v665
      %v698 = vsel %vm634, %v602, %v666
      %v699 = vsel %vm635, %v603, %v667
      %v700 = vsel %vm636, %v604, %v668
      %v701 = vsel %vm637, %v605, %v669
      %v702 = vsel %vm638, %v606, %v670
      %v703 = vsel %vm639, %v607, %v671
      %v704 = vsel %vm640, %v608, %v672
      %v705 = vsel %vm641, %v609, %v673
      %v706 = vsel %vm642, %v610, %v674
      %v707 = vsel %vm643, %v611, %v675
      %v708 = vsel %vm644, %v612, %v676
      %v709 = vsel %vm645, %v613, %v677
      %v710 = vsel %vm646, %v614, %v678
      %v711 = vsel %vm647, %v615, %v679
      %v712 = vsel %vm648, %v616, %v680
      %v713 = vsel %vm649, %v617, %v681
      %v714 = vsel %vm650, %v618, %v682
      %v715 = vsel %vm651, %v619, %v683
      %v716 = vsel %vm652, %v620, %v684
      %717 = vst [vmem:[#allocation9] sm:$0xff] %v685
      %718 = vst [vmem:[#allocation9 + $0x8] sm:$0xff] %v686
      %719 = vst [vmem:[#allocation9 + $0x10] sm:$0xff] %v687
      %720 = vst [vmem:[#allocation9 + $0x18] sm:$0xff] %v688
      %721 = vst [vmem:[#allocation9 + $0x20] sm:$0xff] %v689
      %722 = vst [vmem:[#allocation9 + $0x28] sm:$0xff] %v690
      %723 = vst [vmem:[#allocation9 + $0x30] sm:$0xff] %v691
      %724 = vst [vmem:[#allocation9 + $0x38] sm:$0xff] %v692
      %725 = vst [vmem:[#allocation9 + $0x40] sm:$0xff] %v693
      %726 = vst [vmem:[#allocation9 + $0x48] sm:$0xff] %v694
      %727 = vst [vmem:[#allocation9 + $0x50] sm:$0xff] %v695
      %728 = vst [vmem:[#allocation9 + $0x58] sm:$0xff] %v696
      %729 = vst [vmem:[#allocation9 + $0x60] sm:$0xff] %v697
      %730 = vst [vmem:[#allocation9 + $0x68] sm:$0xff] %v698
      %731 = vst [vmem:[#allocation9 + $0x70] sm:$0xff] %v699
      %732 = vst [vmem:[#allocation9 + $0x78] sm:$0xff] %v700
      %733 = vst [vmem:[#allocation9 + $0x80] sm:$0xff] %v701
      %734 = vst [vmem:[#allocation9 + $0x88] sm:$0xff] %v702
      %735 = vst [vmem:[#allocation9 + $0x90] sm:$0xff] %v703
      %736 = vst [vmem:[#allocation9 + $0x98] sm:$0xff] %v704
      %737 = vst [vmem:[#allocation9 + $0xa0] sm:$0xff] %v705
      %738 = vst [vmem:[#allocation9 + $0xa8] sm:$0xff] %v706
      %739 = vst [vmem:[#allocation9 + $0xb0] sm:$0xff] %v707
      %740 = vst [vmem:[#allocation9 + $0xb8] sm:$0xff] %v708
      %741 = vst [vmem:[#allocation9 + $0xc0] sm:$0xff] %v709
      %742 = vst [vmem:[#allocation9 + $0xc8] sm:$0xff] %v710
      %743 = vst [vmem:[#allocation9 + $0xd0] sm:$0xff] %v711
      %744 = vst [vmem:[#allocation9 + $0xd8] sm:$0xff] %v712
      %745 = vst [vmem:[#allocation9 + $0xe0] sm:$0xff] %v713
      %746 = vst [vmem:[#allocation9 + $0xe8] sm:$0xff] %v714
      %747 = vst [vmem:[#allocation9 + $0xf0] sm:$0xff] %v715
      %748 = vst [vmem:[#allocation9 + $0xf8] sm:$0xff] %v716
    $region33: #{linear_block.1} parent=1 // pred_fallthru
      _
    // Predicated region
    $region34: #{linear_block.1} parent=1 // pred_check
      _
    $region35: #{linear_block.1} parent=1 // pred_check_branch
      %750 = sbr.rel (0) target = $region37
    $region36: #{linear_block.1} parent=1 // pred_region
      %752 = vsyncadd [#allocation5], 0
      %s753 = sshll.u32 [#allocation9], 4
      %s754 = int_to_ptr.vmem [resolvable:$true] %s753
      %s755 = sshll.u32 %s3, 4
      %s756 = int_to_ptr.hbm [resolvable:$true] %s755
      %761 = dma.vmem_to_hbm [thread:$0]  %s754, 4096, %s756, [#allocation5], 256, 256, 16
    $region37: #{linear_block.1} parent=1 // pred_fallthru
      _
    // Predicated region
    $region38: #{linear_block.1} parent=1 // pred_check
      _
    $region39: #{linear_block.1} parent=1 // pred_check_branch
      %763 = sbr.rel (0) target = $region41
    $region40: #{linear_block.1} parent=1 // pred_region
      %765 = dma.done [#allocation5], 4096
    $region41: #{linear_block.1} parent=1 // pred_fallthru
      _
    %766 = vsyncpa [#allocation4], 1
    %767 = vsyncpa [#allocation7], 1
    %768 = vsyncpa [#allocation5], 1

</llo_original>
